<compile_context>
chip_gen: v6e
topology: v6e:2x2x1
jax: 0.10.0
libtpu: 0.0.40
codegen_flags: <defaults>
</compile_context>

<pallas_src>
import jax
import jax.numpy as jnp
from jax.experimental import pallas as pl
from jax.experimental.pallas import tpu as pltpu

# ----------------------------- config ---------------------------------------
VOCAB = 100
TYPE_VOCAB = 2
HIDDEN = 32
NUM_CLASSES = 8
VPAD = 128               # padded combined vocab: word rows 0..99, type rows 100..101
TYPE_OFFSET = VOCAB
OUT_PAD = 128            # lane-dense logits width (sliced to NUM_CLASSES in wrapper)

# packed-weight row offsets (static, 8-aligned)
WF_ROW = 0                       # w_fuse_t : rows [0, 32), cols [0, 32)
BF_ROW = WF_ROW + HIDDEN         # b_fuse   : row 32,       cols [0, 32)
WH_ROW = 40                      # w_head   : rows [40, 168) (only first 32 nonzero)
BH_ROW = WH_ROW + OUT_PAD        # b_head   : row 168
W_ROWS = 176


def _round_up(x, m):
    return (x + m - 1) // m * m


def _pick_batch_block(b, target=256):
    tb = min(b, target)
    while b % tb:
        tb -= 1
    return tb


# --------------------------- Pallas kernel ----------------------------------
def _kernel(tok_ref, img_ref, emb_ref, pimg_ref, w_ref, out_ref):
    ids = tok_ref[0]                           # [TB, S] int32
    tids = tok_ref[1]                          # [TB, S] int32
    mask = tok_ref[2].astype(jnp.float32)      # [TB, S]
    tb, s = ids.shape

    # ---- text branch: gather-as-matmul, mask folded in with one select -----
    # counts[b, v] = sum_s mask[b,s] * [ids[b,s] == v  or  tids[b,s]+OFF == v]
    vidx = jax.lax.broadcasted_iota(jnp.int32, (tb, s, VPAD), 2)
    hit = (vidx == ids[:, :, None]) | (vidx == (tids[:, :, None] + TYPE_OFFSET))
    weighted = jnp.where(hit, mask[:, :, None], 0.0)
    # TODO(synk): at realistic S, accumulate counts over S-chunks with
    # lax.fori_loop(unroll=True) and use bf16 on v6e/v7x to bound vreg pressure.
    counts = jnp.sum(weighted, axis=1)                                 # [TB, VPAD]
    denom = jnp.maximum(jnp.sum(mask, axis=1, keepdims=True), 1.0)     # [TB, 1]
    inv_denom = pl.reciprocal(denom, approx=True)                      # EUP slot
    text_pool = jnp.dot(counts, emb_ref[...],
                        preferred_element_type=jnp.float32) * inv_denom  # [TB, H]

    # ---- image branch: spatial mean + w_img + w_fuse_i == one bf16 matmul --
    img_feat = jnp.dot(img_ref[...], pimg_ref[...],
                       preferred_element_type=jnp.float32)             # [TB, 128]

    # ---- fusion: two dots + add (no lane concatenate) -----------------------
    fuse_pre = (jnp.dot(text_pool, w_ref[WF_ROW:WF_ROW + HIDDEN, :],
                        preferred_element_type=jnp.float32)
                + img_feat
                + w_ref[BF_ROW:BF_ROW + 1, :])                          # [TB, 128]
    fused = jnp.tanh(fuse_pre)   # cols >= HIDDEN are tanh(0) == 0

    # dropout: nn.Dropout in eval mode == identity (inference semantics)

    # ---- classification head (128-wide weights -> lane-dense store) ---------
    logits = (jnp.dot(fused, w_ref[WH_ROW:WH_ROW + OUT_PAD, :],
                      preferred_element_type=jnp.float32)
              + w_ref[BH_ROW:BH_ROW + 1, :])                            # [TB, 128]
    out_ref[...] = logits


# ------------------------------ wrapper --------------------------------------
def full_model_forward(params, input_ids, attention_mask, token_type_ids,
                       image_tensor):
    B, S = input_ids.shape
    _, C, IH, IW = image_tensor.shape
    HW = IH * IW
    CHW = C * HW

    TB = _pick_batch_block(B)
    nb = B // TB

    # Pack the three int token streams into one buffer (1 DMA instead of 3).
    tok = jnp.stack([input_ids.astype(jnp.int32),
                     token_type_ids.astype(jnp.int32),
                     attention_mask.astype(jnp.int32)], axis=0)        # [3, B, S]

    # Image: lane-dense [B, C*HW] (free reshape of contiguous NCHW), bf16 wire.
    img = image_tensor.reshape(B, CHW).astype(jnp.bfloat16)

    # Combined (word + token-type) embedding table, zero-padded to VPAD rows.
    emb = jnp.zeros((VPAD, HIDDEN), jnp.float32)
    emb = emb.at[:VOCAB].set(params["word_emb"].astype(jnp.float32))
    emb = emb.at[TYPE_OFFSET:TYPE_OFFSET + TYPE_VOCAB].set(
        params["type_emb"].astype(jnp.float32))

    # Image pooling + projection folded into one matrix:
    #   pimg[c*HW + j, h] = (w_img @ w_fuse_i)[c, h] / HW      (cols >= H zero)
    # TODO(synk): for large images, add an "arbitrary" grid axis streaming HW
    # chunks into a VMEM accumulator (pl.when init/finalize) instead of this fold.
    w_img_fused = (params["w_img"].astype(jnp.float32)
                   @ params["w_fuse_i"].astype(jnp.float32))           # [C, H]
    pimg = jnp.zeros((CHW, OUT_PAD), jnp.float32)
    pimg = pimg.at[:, :HIDDEN].set(jnp.repeat(w_img_fused / HW, HW, axis=0))
    pimg = pimg.astype(jnp.bfloat16)

    # Pack the remaining small weights/biases into one (W_ROWS, 128) buffer.
    w_pack = jnp.zeros((W_ROWS, OUT_PAD), jnp.float32)
    w_pack = w_pack.at[WF_ROW:WF_ROW + HIDDEN, :HIDDEN].set(params["w_fuse_t"])
    w_pack = w_pack.at[BF_ROW, :HIDDEN].set(params["b_fuse"][0])
    w_pack = w_pack.at[WH_ROW:WH_ROW + HIDDEN, :NUM_CLASSES].set(params["w_head"])
    w_pack = w_pack.at[BH_ROW, :NUM_CLASSES].set(params["b_head"][0])

    # VMEM budget: double-buffered batch-varying blocks + resident constants,
    # generous headroom, capped below v7x's 64 MiB physical VMEM.
    blk_bytes = (3 * _round_up(TB, 8) * _round_up(S, 128) * 4          # tok
                 + _round_up(TB, 16) * CHW * 2                         # img (bf16)
                 + _round_up(TB, 8) * OUT_PAD * 4)                     # out
    const_bytes = (VPAD * 128 * 4 + _round_up(CHW, 16) * OUT_PAD * 2
                   + W_ROWS * OUT_PAD * 4)
    vmem_limit = int(min(48 * 2**20,
                         max(16 * 2**20, 4 * (2 * blk_bytes + const_bytes))))

    flops = 2 * B * (S * VPAD + VPAD * HIDDEN + CHW * OUT_PAD
                     + HIDDEN * OUT_PAD + OUT_PAD * OUT_PAD)
    bytes_accessed = (tok.size * 4 + img.size * 2 + emb.size * 4
                      + pimg.size * 2 + w_pack.size * 4 + B * OUT_PAD * 4)

    out = pl.pallas_call(
        _kernel,
        out_shape=jax.ShapeDtypeStruct((B, OUT_PAD), jnp.float32),
        grid_spec=pltpu.PrefetchScalarGridSpec(
            num_scalar_prefetch=0,
            grid=(nb,),
            in_specs=[
                pl.BlockSpec((3, TB, S), lambda i: (0, i, 0)),         # tok
                pl.BlockSpec((TB, CHW), lambda i: (i, 0)),             # img
                pl.BlockSpec((VPAD, HIDDEN), lambda i: (0, 0)),        # emb
                pl.BlockSpec((CHW, OUT_PAD), lambda i: (0, 0)),        # pimg
                pl.BlockSpec((W_ROWS, OUT_PAD), lambda i: (0, 0)),     # w_pack
            ],
            out_specs=pl.BlockSpec((TB, OUT_PAD), lambda i: (i, 0)),
        ),
        compiler_params=pltpu.CompilerParams(
            dimension_semantics=("parallel",),
            vmem_limit_bytes=vmem_limit),
        cost_estimate=pl.CostEstimate(flops=flops,
                                      transcendentals=B * (OUT_PAD + 1),
                                      bytes_accessed=bytes_accessed),
    )(tok, img, emb, pimg, w_pack)
    return out[:, :NUM_CLASSES]


# ------------------------ plain-JAX reference --------------------------------
def reference_forward(params, input_ids, attention_mask, token_type_ids,
                      image_tensor):
    text_emb = (params["word_emb"][input_ids]
                + params["type_emb"][token_type_ids]).astype(jnp.float32)
    mask = attention_mask.astype(jnp.float32)
    text_sum = jnp.sum(text_emb * mask[:, :, None], axis=1)
    denom = jnp.maximum(jnp.sum(mask, axis=1, keepdims=True), 1.0)
    text_pool = text_sum / denom
    img_pool = jnp.mean(image_tensor.astype(jnp.float32), axis=(2, 3))
    img_feat = img_pool @ params["w_img"]
    fused = jnp.tanh(text_pool @ params["w_fuse_t"]
                     + img_feat @ params["w_fuse_i"] + params["b_fuse"])
    return fused @ params["w_head"] + params["b_head"]


# ------------------------- deterministic params ------------------------------
def init_params(key, channels):
    ks = jax.random.split(key, 8)
    scale = 0.02
    return {
        "word_emb": scale * jax.random.normal(ks[0], (VOCAB, HIDDEN), jnp.float32),
        "type_emb": scale * jax.random.normal(ks[1], (TYPE_VOCAB, HIDDEN), jnp.float32),
        "w_img":    scale * jax.random.normal(ks[2], (channels, HIDDEN), jnp.float32),
        "w_fuse_t": scale * jax.random.normal(ks[3], (HIDDEN, HIDDEN), jnp.float32),
        "w_fuse_i": scale * jax.random.normal(ks[4], (HIDDEN, HIDDEN), jnp.float32),
        "b_fuse":   scale * jax.random.normal(ks[6], (1, HIDDEN), jnp.float32),
        "w_head":   scale * jax.random.normal(ks[5], (HIDDEN, NUM_CLASSES), jnp.float32),
        "b_head":   scale * jax.random.normal(ks[7], (1, NUM_CLASSES), jnp.float32),
    }


# -------------------------------- main ---------------------------------------
if __name__ == "__main__":
    B, S, C, IMG = 2, 8, 4, 16

    key = jax.random.PRNGKey(0)
    k_ids, k_img, k_params = jax.random.split(key, 3)

    input_ids = jax.random.randint(k_ids, (B, S), 0, VOCAB, dtype=jnp.int32)
    attention_mask = jnp.ones((B, S), jnp.int32).at[1, S - 2:].set(0)
    token_type_ids = jnp.zeros((B, S), jnp.int32).at[:, S // 2:].set(1)
    image_tensor = jax.random.normal(k_img, (B, C, IMG, IMG), jnp.float32)

    params = init_params(k_params, C)

    # TODO(synk): Full_Model's task-head registry / set_active_head is host-side
    # Python control flow; only the active head's forward is implemented here.
    logits = full_model_forward(params, input_ids, attention_mask,
                                token_type_ids, image_tensor)
    jax.block_until_ready(logits)
    assert logits.shape == (B, NUM_CLASSES)

    ref = reference_forward(params, input_ids, attention_mask,
                            token_type_ids, image_tensor)
    assert jnp.allclose(logits, ref, atol=1e-5, rtol=1e-5), "mismatch vs reference"
    print("KERNEL_OK")
</pallas_src>

<mosaic_0001>
module attributes {stable_mosaic.version = 11 : i64} {
  func.func @_kernel(%arg0: i32, %arg1: memref<3x2x8xi32, #tpu.memory_space<vmem>>, %arg2: memref<2x1024xbf16, #tpu.memory_space<vmem>>, %arg3: memref<128x32xf32, #tpu.memory_space<vmem>>, %arg4: memref<1024x128xbf16, #tpu.memory_space<vmem>>, %arg5: memref<176x128xf32, #tpu.memory_space<vmem>>, %arg6: memref<2x128xf32, #tpu.memory_space<vmem>>) attributes {dimension_semantics = [#tpu.dimension_semantics<parallel>], iteration_bounds = array<i64: 1>, scalar_prefetch = 0 : i64, scratch_operands = 0 : i64, tpu.core_type = #tpu.core_type<tc>, window_params = [{transform_indices = @transform_0, window_bounds = array<i64: 3, 2, 8>}, {transform_indices = @transform_1, window_bounds = array<i64: 2, 1024>}, {pipeline_mode = #tpu.pipeline_mode<synchronous>, transform_indices = @transform_2, window_bounds = array<i64: 128, 32>}, {pipeline_mode = #tpu.pipeline_mode<synchronous>, transform_indices = @transform_3, window_bounds = array<i64: 1024, 128>}, {pipeline_mode = #tpu.pipeline_mode<synchronous>, transform_indices = @transform_4, window_bounds = array<i64: 176, 128>}, {transform_indices = @transform_5, window_bounds = array<i64: 2, 128>}]} {
    %c0 = arith.constant 0 : index
    %c0_0 = arith.constant 0 : index
    %c0_1 = arith.constant 0 : index
    %0 = vector.load %arg1[%c0, %c0_0, %c0_1] : memref<3x2x8xi32, #tpu.memory_space<vmem>>, vector<1x2x8xi32>
    %1 = vector.shape_cast %0 : vector<1x2x8xi32> to vector<2x8xi32>
    %c1 = arith.constant 1 : index
    %c0_2 = arith.constant 0 : index
    %c0_3 = arith.constant 0 : index
    %2 = vector.load %arg1[%c1, %c0_2, %c0_3] : memref<3x2x8xi32, #tpu.memory_space<vmem>>, vector<1x2x8xi32>
    %3 = vector.shape_cast %2 : vector<1x2x8xi32> to vector<2x8xi32>
    %c2 = arith.constant 2 : index
    %c0_4 = arith.constant 0 : index
    %c0_5 = arith.constant 0 : index
    %4 = vector.load %arg1[%c2, %c0_4, %c0_5] : memref<3x2x8xi32, #tpu.memory_space<vmem>>, vector<1x2x8xi32>
    %5 = vector.shape_cast %4 : vector<1x2x8xi32> to vector<2x8xi32>
    %6 = arith.sitofp %5 : vector<2x8xi32> to vector<2x8xf32>
    %7 = tpu.iota {dimensions = array<i32: 2>} : vector<2x8x128xi32>
    %8 = vector.shape_cast %1 : vector<2x8xi32> to vector<2x8x1xi32>
    %9 = vector.broadcast %8 : vector<2x8x1xi32> to vector<2x8x128xi32>
    %10 = arith.cmpi eq, %7, %9 : vector<2x8x128xi32>
    %11 = vector.shape_cast %3 : vector<2x8xi32> to vector<2x8x1xi32>
    %c100_i32 = arith.constant 100 : i32
    %12 = vector.broadcast %c100_i32 : i32 to vector<2x8x1xi32>
    %13 = arith.addi %11, %12 : vector<2x8x1xi32>
    %14 = vector.broadcast %13 : vector<2x8x1xi32> to vector<2x8x128xi32>
    %15 = arith.cmpi eq, %7, %14 : vector<2x8x128xi32>
    %16 = arith.ori %10, %15 : vector<2x8x128xi1>
    %17 = vector.shape_cast %6 : vector<2x8xf32> to vector<2x8x1xf32>
    %cst = arith.constant 0.000000e+00 : f32
    %18 = vector.shape_cast %17 : vector<2x8x1xf32> to vector<2x8x1xf32>
    %19 = vector.broadcast %18 : vector<2x8x1xf32> to vector<2x8x128xf32>
    %20 = vector.broadcast %cst : f32 to vector<2x8x128xf32>
    %21 = arith.select %16, %19, %20 : vector<2x8x128xi1>, vector<2x8x128xf32>
    %cst_6 = arith.constant dense<0.000000e+00> : vector<2x128xf32>
    %22 = vector.multi_reduction <add>, %21, %cst_6 [1] : vector<2x8x128xf32> to vector<2x128xf32>
    %cst_7 = arith.constant dense<0.000000e+00> : vector<2xf32>
    %23 = vector.multi_reduction <add>, %6, %cst_7 [1] : vector<2x8xf32> to vector<2xf32>
    %24 = vector.shape_cast %23 : vector<2xf32> to vector<2x1xf32>
    %cst_8 = arith.constant 1.000000e+00 : f32
    %25 = vector.broadcast %cst_8 : f32 to vector<2x1xf32>
    %26 = arith.maximumf %24, %25 : vector<2x1xf32>
    %27 = tpu.reciprocal %26 {approx = true} : vector<2x1xf32> -> vector<2x1xf32>
    %c0_9 = arith.constant 0 : index
    %c0_10 = arith.constant 0 : index
    %28 = vector.load %arg3[%c0_9, %c0_10] : memref<128x32xf32, #tpu.memory_space<vmem>>, vector<128x32xf32>
    %cst_11 = arith.constant dense<0.000000e+00> : vector<2x32xf32>
    %29 = tpu.matmul %22, %28, %cst_11 {dimension_numbers = #tpu.dot_dimension_numbers<[1], [0], [0], [1], [0, 0, 1, 1], [], []>} : vector<2x128xf32>, vector<128x32xf32>, vector<2x32xf32> -> vector<2x32xf32>
    %30 = vector.broadcast %27 : vector<2x1xf32> to vector<2x32xf32>
    %31 = arith.mulf %29, %30 : vector<2x32xf32>
    %c0_12 = arith.constant 0 : index
    %c0_13 = arith.constant 0 : index
    %32 = vector.load %arg2[%c0_12, %c0_13] : memref<2x1024xbf16, #tpu.memory_space<vmem>>, vector<2x1024xbf16>
    %c0_14 = arith.constant 0 : index
    %c0_15 = arith.constant 0 : index
    %33 = vector.load %arg4[%c0_14, %c0_15] : memref<1024x128xbf16, #tpu.memory_space<vmem>>, vector<1024x128xbf16>
    %cst_16 = arith.constant dense<0.000000e+00> : vector<2x128xf32>
    %34 = tpu.matmul %32, %33, %cst_16 {dimension_numbers = #tpu.dot_dimension_numbers<[1], [0], [0], [1], [0, 0, 1, 1], [], []>} : vector<2x1024xbf16>, vector<1024x128xbf16>, vector<2x128xf32> -> vector<2x128xf32>
    %c0_17 = arith.constant 0 : index
    %c0_18 = arith.constant 0 : index
    %35 = vector.load %arg5[%c0_17, %c0_18] : memref<176x128xf32, #tpu.memory_space<vmem>>, vector<32x128xf32>
    %cst_19 = arith.constant dense<0.000000e+00> : vector<2x128xf32>
    %36 = tpu.matmul %31, %35, %cst_19 {dimension_numbers = #tpu.dot_dimension_numbers<[1], [0], [0], [1], [0, 0, 1, 1], [], []>} : vector<2x32xf32>, vector<32x128xf32>, vector<2x128xf32> -> vector<2x128xf32>
    %37 = arith.addf %36, %34 : vector<2x128xf32>
    %c32 = arith.constant 32 : index
    %c0_20 = arith.constant 0 : index
    %38 = vector.load %arg5[%c32, %c0_20] : memref<176x128xf32, #tpu.memory_space<vmem>>, vector<1x128xf32>
    %39 = vector.broadcast %38 : vector<1x128xf32> to vector<2x128xf32>
    %40 = arith.addf %37, %39 : vector<2x128xf32>
    %41 = math.tanh %40 : vector<2x128xf32>
    %c40 = arith.constant 40 : index
    %c0_21 = arith.constant 0 : index
    %42 = vector.load %arg5[%c40, %c0_21] : memref<176x128xf32, #tpu.memory_space<vmem>>, vector<128x128xf32>
    %cst_22 = arith.constant dense<0.000000e+00> : vector<2x128xf32>
    %43 = tpu.matmul %41, %42, %cst_22 {dimension_numbers = #tpu.dot_dimension_numbers<[1], [0], [0], [1], [0, 0, 1, 1], [], []>} : vector<2x128xf32>, vector<128x128xf32>, vector<2x128xf32> -> vector<2x128xf32>
    %c168 = arith.constant 168 : index
    %c0_23 = arith.constant 0 : index
    %44 = vector.load %arg5[%c168, %c0_23] : memref<176x128xf32, #tpu.memory_space<vmem>>, vector<1x128xf32>
    %45 = vector.broadcast %44 : vector<1x128xf32> to vector<2x128xf32>
    %46 = arith.addf %43, %45 : vector<2x128xf32>
    %c0_24 = arith.constant 0 : index
    %c0_25 = arith.constant 0 : index
    %47 = vector.load %arg6[%c0_24, %c0_25] : memref<2x128xf32, #tpu.memory_space<vmem>>, vector<2x128xf32>
    tpu.vector_store %arg6[%c0_24, %c0_25], %46 {strides = array<i32>} : memref<2x128xf32, #tpu.memory_space<vmem>>, vector<2x128xf32>,
    return
  }
  func.func @transform_0(%arg0: i32) -> (i32, i32, i32) {
    %c0_i32 = arith.constant 0 : i32
    %c0_i32_0 = arith.constant 0 : i32
    %c0_i32_1 = arith.constant 0 : i32
    return %c0_i32, %arg0, %c0_i32_0 : i32, i32, i32
  }
  func.func @transform_1(%arg0: i32) -> (i32, i32) {
    %c0_i32 = arith.constant 0 : i32
    %c0_i32_0 = arith.constant 0 : i32
    return %arg0, %c0_i32 : i32, i32
  }
  func.func @transform_2(%arg0: i32) -> (i32, i32) {
    %c0_i32 = arith.constant 0 : i32
    %c0_i32_0 = arith.constant 0 : i32
    %c0_i32_1 = arith.constant 0 : i32
    return %c0_i32, %c0_i32_0 : i32, i32
  }
  func.func @transform_3(%arg0: i32) -> (i32, i32) {
    %c0_i32 = arith.constant 0 : i32
    %c0_i32_0 = arith.constant 0 : i32
    %c0_i32_1 = arith.constant 0 : i32
    return %c0_i32, %c0_i32_0 : i32, i32
  }
  func.func @transform_4(%arg0: i32) -> (i32, i32) {
    %c0_i32 = arith.constant 0 : i32
    %c0_i32_0 = arith.constant 0 : i32
    %c0_i32_1 = arith.constant 0 : i32
    return %c0_i32, %c0_i32_0 : i32, i32
  }
  func.func @transform_5(%arg0: i32) -> (i32, i32) {
    %c0_i32 = arith.constant 0 : i32
    %c0_i32_0 = arith.constant 0 : i32
    return %arg0, %c0_i32 : i32, i32
  }
}

</mosaic_0001>

<llo_original>
// kernel: tpu_custom_call.1
$region0: #{tpu_custom_call.1}
  #allocation0 [shape = 'u32[]', space=smem, size = 0x4, offset = 0x4, fixed_abs, tag = 'smem constant byte address 0x4 - core index']
  #allocation1 [shape = 'u32[144,128]{1,0:T(1,128)}', space=vmem, size = 0x12000, scoped, tag = 'internal scratch']
  %s0 = inlined_call_operand.vmem [shape: s32[3,2,8], index: 0, kind: input, shape index: {}]
  %s1 = inlined_call_operand.vmem [shape: bf16[2,1024], index: 1, kind: input, shape index: {}]
  %s2 = inlined_call_operand.vmem [shape: f32[128,32], index: 2, kind: input, shape index: {}]
  %s3 = inlined_call_operand.hbm [shape: bf16[1024,128], index: 3, kind: input, shape index: {}]
  %s4 = inlined_call_operand.hbm [shape: f32[176,128], index: 4, kind: input, shape index: {}]
  %s5 = inlined_call_operand.hbm [shape: f32[2,128], index: 5, kind: output, shape index: {}]
  %s6 = sld [smem:[#allocation0]]
  $region38: #{tpu_custom_call.1} parent=0
    _
  %s8 = ssub.s32 1, %s6
  %s9 = scalar_select 0, %s8, %s6
  $region1: #{tpu_custom_call.1} parent=0
    #allocation2 [shape = 'u8[262144]{0}', space=vmem, size = 0x40000, scoped, tag = 'input window, operand 3, single buffered']
    #allocation3 [shape = 's32[1]{0}', space=sflag, size = 0x4, scoped, tag = 'scoped memory for tpu_custom_call.1']
    #allocation4 [shape = 's32[1]{0}', space=sflag, size = 0x4, scoped, tag = 'scoped memory for tpu_custom_call.1']
    #allocation5 [shape = 'u8[90112]{0}', space=vmem, size = 0x16000, scoped, tag = 'input window, operand 4, single buffered']
    #allocation6 [shape = 's32[1]{0}', space=sflag, size = 0x4, scoped, tag = 'scoped memory for tpu_custom_call.1']
    #allocation7 [shape = 'u8[1024]{0}', space=vmem, size = 0x400, scoped, tag = 'output window, operand 0, single buffered']
    %10 = vsyncpa [#allocation3], 0
    %11 = vsyncpa [#allocation6], 0
    %12 = vsyncpa [#allocation4], 0
    // Predicated region
    $region2: #{tpu_custom_call.1} parent=1 // pred_check
      _
    $region3: #{tpu_custom_call.1} parent=1 // pred_check_branch
      %14 = sbr.rel (0) target = $region5
    $region4: #{tpu_custom_call.1} parent=1 // pred_region
      _
    $region5: #{tpu_custom_call.1} parent=1 // pred_fallthru
      _
    // Predicated region
    $region6: #{tpu_custom_call.1} parent=1 // pred_check
      _
    $region7: #{tpu_custom_call.1} parent=1 // pred_check_branch
      %16 = sbr.rel (0) target = $region9
    $region8: #{tpu_custom_call.1} parent=1 // pred_region
      _
    $region9: #{tpu_custom_call.1} parent=1 // pred_fallthru
      _
    // Predicated region
    $region10: #{tpu_custom_call.1} parent=1 // pred_check
      _
    $region11: #{tpu_custom_call.1} parent=1 // pred_check_branch
      %18 = sbr.rel (0) target = $region13
    $region12: #{tpu_custom_call.1} parent=1 // pred_region
      _
    $region13: #{tpu_custom_call.1} parent=1 // pred_fallthru
      _
    // Predicated region
    $region14: #{tpu_custom_call.1} parent=1 // pred_check
      _
    $region15: #{tpu_custom_call.1} parent=1 // pred_check_branch
      %20 = sbr.rel (0) target = $region17
    $region16: #{tpu_custom_call.1} parent=1 // pred_region
      %s22 = ssub.s32 8192, 8192
      %23 = vsyncadd [#allocation3], %s22
      %s24 = sshll.u32 [#allocation2], 4
      %s25 = int_to_ptr.vmem [resolvable:$true] %s24
      %30 = dma.hbm_to_vmem [thread:$0]  %s3, 8192, %s25, [#allocation3], 64, 64, 4
    $region17: #{tpu_custom_call.1} parent=1 // pred_fallthru
      _
    // Predicated region
    $region18: #{tpu_custom_call.1} parent=1 // pred_check
      _
    $region19: #{tpu_custom_call.1} parent=1 // pred_check_branch
      %32 = sbr.rel (0) target = $region21
    $region20: #{tpu_custom_call.1} parent=1 // pred_region
      %s34 = ssub.s32 2816, 2816
      %35 = vsyncadd [#allocation6], %s34
      %s36 = sshll.u32 [#allocation5], 4
      %s37 = int_to_ptr.vmem [resolvable:$true] %s36
      %42 = dma.hbm_to_vmem [thread:$0]  %s4, 2816, %s37, [#allocation6], 128, 128, 8
    $region21: #{tpu_custom_call.1} parent=1 // pred_fallthru
      _
    // Predicated region
    $region22: #{tpu_custom_call.1} parent=1 // pred_check
      _
    $region23: #{tpu_custom_call.1} parent=1 // pred_check_branch
      %44 = sbr.rel (0) target = $region25
    $region24: #{tpu_custom_call.1} parent=1 // pred_region
      %45 = dma.done [#allocation3], 8192
    $region25: #{tpu_custom_call.1} parent=1 // pred_fallthru
      _
    // Predicated region
    $region26: #{tpu_custom_call.1} parent=1 // pred_check
      _
    $region27: #{tpu_custom_call.1} parent=1 // pred_check_branch
      %47 = sbr.rel (0) target = $region29
    $region28: #{tpu_custom_call.1} parent=1 // pred_region
      %48 = dma.done [#allocation6], 2816
    $region29: #{tpu_custom_call.1} parent=1 // pred_fallthru
      _
    %v50 = vld [vmem:[%s0] sm:$0x3]
    %s51 = scalar_lea.vmem %s0, 2
    %v52 = vld [vmem:[%s51] sm:$0x3]
    %s53 = scalar_lea.vmem %s0, 4
    %v54 = vld [vmem:[%s53] sm:$0x3]
    %v55 = vcvt.s32.f32 %v54
    %v56 = vlaneseq
    %v57 = vand.u32 %v56, 127
    %v58 = vlaneseq
    %v59 = vshrl.u32 %v58, 7
    %v60 = vsub.s32 0, %v59
    %v61 = vrot.slane %v50, %v60
    %63 = vbcast.lane.b32.xlu0 %v61, 256
    %v64 = vpop.permute.xlu0 %63
    %v65 = vlaneseq
    %v66 = vshrl.u32 %v65, 7
    %v67 = vsub.s32 1, %v66
    %v68 = vrot.slane %v50, %v67
    %70 = vbcast.lane.b32.xlu0 %v68, 256
    %v71 = vpop.permute.xlu0 %70
    %vm72 = vcmp.eq.s32.totalorder %v57, %v64
    %vm73 = vcmp.eq.s32.totalorder %v57, %v71
    %v74 = vlaneseq
    %v75 = vshrl.u32 %v74, 7
    %v76 = vsub.s32 0, %v75
    %v77 = vrot.slane %v52, %v76
    %79 = vbcast.lane.b32.xlu0 %v77, 256
    %v80 = vpop.permute.xlu0 %79
    %v81 = vlaneseq
    %v82 = vshrl.u32 %v81, 7
    %v83 = vsub.s32 1, %v82
    %v84 = vrot.slane %v52, %v83
    %86 = vbcast.lane.b32.xlu0 %v84, 256
    %v87 = vpop.permute.xlu0 %86
    %v88 = vadd.s32 %v80, 100
    %v89 = vadd.s32 %v87, 100
    %vm90 = vcmp.eq.s32.totalorder %v57, %v88
    %vm91 = vcmp.eq.s32.totalorder %v57, %v89
    %vm92 = vmor %vm72, %vm90
    %vm93 = vmor %vm73, %vm91
    %v94 = vlaneseq
    %v95 = vshrl.u32 %v94, 7
    %v96 = vsub.s32 0, %v95
    %v97 = vrot.slane %v55, %v96
    %99 = vbcast.lane.b32.xlu0 %v97, 256
    %v100 = vpop.permute.xlu0 %99
    %v101 = vlaneseq
    %v102 = vshrl.u32 %v101, 7
    %v103 = vsub.s32 1, %v102
    %v104 = vrot.slane %v55, %v103
    %106 = vbcast.lane.b32.xlu0 %v104, 256
    %v107 = vpop.permute.xlu0 %106
    %v108 = vsel %vm92, %v100, 0.0
    %v109 = vsel %vm93, %v107, 0.0
    %v110 = vrot.slane %v108, 4
    %v111 = vadd.f32 %v108, %v110
    %v112 = vrot.slane %v111, 2
    %v113 = vadd.f32 %v111, %v112
    %v114 = vrot.slane %v113, 1
    %v115 = vadd.f32 %v113, %v114
    %v116 = vrot.slane %v109, 4
    %v117 = vadd.f32 %v109, %v116
    %v118 = vrot.slane %v117, 2
    %v119 = vadd.f32 %v117, %v118
    %v120 = vrot.slane %v119, 1
    %v121 = vadd.f32 %v119, %v120
    %vm122 = vcmask 58368
    %v123 = vsel %vm122, %v55, 0.0
    %124 = vadd.xlane.f32.xlu0 %v123
    %v125 = vpop.xlane.xlu0 %124
    %v126 = vmax.f32 %v125, 1.0
    %v127 = vrcp.pop %v126
    %v128 = vld [vmem:[%s2] sm:$0xff]
    %v129 = vld [vmem:[%s2 + $0x8] sm:$0xff]
    %v130 = vld [vmem:[%s2 + $0x10] sm:$0xff]
    %v131 = vld [vmem:[%s2 + $0x18] sm:$0xff]
    %v132 = vld [vmem:[%s2 + $0x20] sm:$0xff]
    %v133 = vld [vmem:[%s2 + $0x28] sm:$0xff]
    %v134 = vld [vmem:[%s2 + $0x30] sm:$0xff]
    %v135 = vld [vmem:[%s2 + $0x38] sm:$0xff]
    %v136 = vld [vmem:[%s2 + $0x40] sm:$0xff]
    %v137 = vld [vmem:[%s2 + $0x48] sm:$0xff]
    %v138 = vld [vmem:[%s2 + $0x50] sm:$0xff]
    %v139 = vld [vmem:[%s2 + $0x58] sm:$0xff]
    %v140 = vld [vmem:[%s2 + $0x60] sm:$0xff]
    %v141 = vld [vmem:[%s2 + $0x68] sm:$0xff]
    %v142 = vld [vmem:[%s2 + $0x70] sm:$0xff]
    %v143 = vld [vmem:[%s2 + $0x78] sm:$0xff]
    %vm146 = vcmask 1041409
    %v147 = vsel %vm146, %v121, %v115
    %149 = vmatprep.subr.mxu0 0.0
    %150 = vmatpush1.msra.mxu0 %v143
    %151 = vmatprep.subr.mxu0 0.0
    %152 = vmatpush1.msra.mxu0 %v142
    %153 = vmatprep.subr.mxu0 0.0
    %154 = vmatpush1.msra.mxu0 %v141
    %155 = vmatprep.subr.mxu0 0.0
    %156 = vmatpush1.msra.mxu0 %v140
    %157 = vmatprep.subr.mxu0 0.0
    %158 = vmatpush1.msra.mxu0 %v139
    %159 = vmatprep.subr.mxu0 0.0
    %160 = vmatpush1.msra.mxu0 %v138
    %161 = vmatprep.subr.mxu0 0.0
    %162 = vmatpush1.msra.mxu0 %v137
    %163 = vmatprep.subr.mxu0 0.0
    %164 = vmatpush1.msra.mxu0 %v136
    %165 = vmatprep.subr.mxu0 0.0
    %166 = vmatpush1.msra.mxu0 %v135
    %167 = vmatprep.subr.mxu0 0.0
    %168 = vmatpush1.msra.mxu0 %v134
    %169 = vmatprep.subr.mxu0 0.0
    %170 = vmatpush1.msra.mxu0 %v133
    %171 = vmatprep.subr.mxu0 0.0
    %172 = vmatpush1.msra.mxu0 %v132
    %173 = vmatprep.subr.mxu0 0.0
    %174 = vmatpush1.msra.mxu0 %v131
    %175 = vmatprep.subr.mxu0 0.0
    %176 = vmatpush1.msra.mxu0 %v130
    %177 = vmatprep.subr.mxu0 0.0
    %178 = vmatpush1.msra.mxu0 %v129
    %179 = vmatprep.subr.mxu0 0.0
    %180 = vmatpush1.msra.mxu0 %v128
    %181 = vmatprep.subr.mxu0 0.0
    %182 = vmatpush2.msra.mxu0 0.0
    %183 = vmatprep.subr.mxu0 0.0
    %184 = vmatpush2.msra.mxu0 0.0
    %185 = vmatprep.subr.mxu0 0.0
    %186 = vmatpush2.msra.mxu0 0.0
    %187 = vmatprep.subr.mxu0 0.0
    %188 = vmatpush2.msra.mxu0 0.0
    %189 = vmatprep.subr.mxu0 0.0
    %190 = vmatpush2.msra.mxu0 0.0
    %191 = vmatprep.subr.mxu0 0.0
    %192 = vmatpush2.msra.mxu0 0.0
    %193 = vmatprep.subr.mxu0 0.0
    %194 = vmatpush2.msra.mxu0 0.0
    %195 = vmatprep.subr.mxu0 0.0
    %196 = vmatpush2.msra.mxu0 0.0
    %197 = vmatprep.subr.mxu0 0.0
    %198 = vmatpush2.msra.mxu0 0.0
    %199 = vmatprep.subr.mxu0 0.0
    %200 = vmatpush2.msra.mxu0 0.0
    %201 = vmatprep.subr.mxu0 0.0
    %202 = vmatpush2.msra.mxu0 0.0
    %203 = vmatprep.subr.mxu0 0.0
    %204 = vmatpush2.msra.mxu0 0.0
    %205 = vmatprep.subr.mxu0 0.0
    %206 = vmatpush2.msra.mxu0 0.0
    %207 = vmatprep.subr.mxu0 0.0
    %208 = vmatpush2.msra.mxu0 0.0
    %209 = vmatprep.subr.mxu0 0.0
    %210 = vmatpush2.msra.mxu0 0.0
    %211 = vmatprep.subr.mxu0 0.0
    %212 = vmatpush2.msra.mxu0 0.0
    %213 = vmatprep.mubr.f32.mxu0 0.0
    %214 = vmatmul.mubr.f32.gmra.mxu0 %v147
    %v215 = vpop.f32.mrf.mxu0
    %v216 = vadd.f32 0.0, %v215
    %v217 = vpop.f32.mrf.mxu0
    %218 = vdwg.mxu0
    %v219 = vmul.f32 %v216, %v127
    %v220 = vld [vmem:[%s1] sm:$0xff]
    %v221 = vld [vmem:[#allocation2] sm:$0xf]
    %v222 = vld [vmem:[#allocation2 + $0x4] sm:$0xf]
    %v223 = vld [vmem:[#allocation2 + $0x8] sm:$0xf]
    %v224 = vld [vmem:[#allocation2 + $0xc] sm:$0xf]
    %v225 = vld [vmem:[#allocation2 + $0x10] sm:$0xf]
    %v226 = vld [vmem:[#allocation2 + $0x14] sm:$0xf]
    %v227 = vld [vmem:[#allocation2 + $0x18] sm:$0xf]
    %v228 = vld [vmem:[#allocation2 + $0x1c] sm:$0xf]
    %v229 = vld [vmem:[#allocation2 + $0x20] sm:$0xf]
    %v230 = vld [vmem:[#allocation2 + $0x24] sm:$0xf]
    %v231 = vld [vmem:[#allocation2 + $0x28] sm:$0xf]
    %v232 = vld [vmem:[#allocation2 + $0x2c] sm:$0xf]
    %v233 = vld [vmem:[#allocation2 + $0x30] sm:$0xf]
    %v234 = vld [vmem:[#allocation2 + $0x34] sm:$0xf]
    %v235 = vld [vmem:[#allocation2 + $0x38] sm:$0xf]
    %v236 = vld [vmem:[#allocation2 + $0x3c] sm:$0xf]
    %v237 = vld [vmem:[#allocation2 + $0x40] sm:$0xf]
    %v238 = vld [vmem:[#allocation2 + $0x44] sm:$0xf]
    %v239 = vld [vmem:[#allocation2 + $0x48] sm:$0xf]
    %v240 = vld [vmem:[#allocation2 + $0x4c] sm:$0xf]
    %v241 = vld [vmem:[#allocation2 + $0x50] sm:$0xf]
    %v242 = vld [vmem:[#allocation2 + $0x54] sm:$0xf]
    %v243 = vld [vmem:[#allocation2 + $0x58] sm:$0xf]
    %v244 = vld [vmem:[#allocation2 + $0x5c] sm:$0xf]
    %v245 = vld [vmem:[#allocation2 + $0x60] sm:$0xf]
    %v246 = vld [vmem:[#allocation2 + $0x64] sm:$0xf]
    %v247 = vld [vmem:[#allocation2 + $0x68] sm:$0xf]
    %v248 = vld [vmem:[#allocation2 + $0x6c] sm:$0xf]
    %v249 = vld [vmem:[#allocation2 + $0x70] sm:$0xf]
    %v250 = vld [vmem:[#allocation2 + $0x74] sm:$0xf]
    %v251 = vld [vmem:[#allocation2 + $0x78] sm:$0xf]
    %v252 = vld [vmem:[#allocation2 + $0x7c] sm:$0xf]
    %v253 = vld [vmem:[#allocation2 + $0x80] sm:$0xf]
    %v254 = vld [vmem:[#allocation2 + $0x84] sm:$0xf]
    %v255 = vld [vmem:[#allocation2 + $0x88] sm:$0xf]
    %v256 = vld [vmem:[#allocation2 + $0x8c] sm:$0xf]
    %v257 = vld [vmem:[#allocation2 + $0x90] sm:$0xf]
    %v258 = vld [vmem:[#allocation2 + $0x94] sm:$0xf]
    %v259 = vld [vmem:[#allocation2 + $0x98] sm:$0xf]
    %v260 = vld [vmem:[#allocation2 + $0x9c] sm:$0xf]
    %v261 = vld [vmem:[#allocation2 + $0xa0] sm:$0xf]
    %v262 = vld [vmem:[#allocation2 + $0xa4] sm:$0xf]
    %v263 = vld [vmem:[#allocation2 + $0xa8] sm:$0xf]
    %v264 = vld [vmem:[#allocation2 + $0xac] sm:$0xf]
    %v265 = vld [vmem:[#allocation2 + $0xb0] sm:$0xf]
    %v266 = vld [vmem:[#allocation2 + $0xb4] sm:$0xf]
    %v267 = vld [vmem:[#allocation2 + $0xb8] sm:$0xf]
    %v268 = vld [vmem:[#allocation2 + $0xbc] sm:$0xf]
    %v269 = vld [vmem:[#allocation2 + $0xc0] sm:$0xf]
    %v270 = vld [vmem:[#allocation2 + $0xc4] sm:$0xf]
    %v271 = vld [vmem:[#allocation2 + $0xc8] sm:$0xf]
    %v272 = vld [vmem:[#allocation2 + $0xcc] sm:$0xf]
    %v273 = vld [vmem:[#allocation2 + $0xd0] sm:$0xf]
    %v274 = vld [vmem:[#allocation2 + $0xd4] sm:$0xf]
    %v275 = vld [vmem:[#allocation2 + $0xd8] sm:$0xf]
    %v276 = vld [vmem:[#allocation2 + $0xdc] sm:$0xf]
    %v277 = vld [vmem:[#allocation2 + $0xe0] sm:$0xf]
    %v278 = vld [vmem:[#allocation2 + $0xe4] sm:$0xf]
    %v279 = vld [vmem:[#allocation2 + $0xe8] sm:$0xf]
    %v280 = vld [vmem:[#allocation2 + $0xec] sm:$0xf]
    %v281 = vld [vmem:[#allocation2 + $0xf0] sm:$0xf]
    %v282 = vld [vmem:[#allocation2 + $0xf4] sm:$0xf]
    %v283 = vld [vmem:[#allocation2 + $0xf8] sm:$0xf]
    %v284 = vld [vmem:[#allocation2 + $0xfc] sm:$0xf]
    %v285 = vld [vmem:[#allocation2 + $0x100] sm:$0xf]
    %v286 = vld [vmem:[#allocation2 + $0x104] sm:$0xf]
    %v287 = vld [vmem:[#allocation2 + $0x108] sm:$0xf]
    %v288 = vld [vmem:[#allocation2 + $0x10c] sm:$0xf]
    %v289 = vld [vmem:[#allocation2 + $0x110] sm:$0xf]
    %v290 = vld [vmem:[#allocation2 + $0x114] sm:$0xf]
    %v291 = vld [vmem:[#allocation2 + $0x118] sm:$0xf]
    %v292 = vld [vmem:[#allocation2 + $0x11c] sm:$0xf]
    %v293 = vld [vmem:[#allocation2 + $0x120] sm:$0xf]
    %v294 = vld [vmem:[#allocation2 + $0x124] sm:$0xf]
    %v295 = vld [vmem:[#allocation2 + $0x128] sm:$0xf]
    %v296 = vld [vmem:[#allocation2 + $0x12c] sm:$0xf]
    %v297 = vld [vmem:[#allocation2 + $0x130] sm:$0xf]
    %v298 = vld [vmem:[#allocation2 + $0x134] sm:$0xf]
    %v299 = vld [vmem:[#allocation2 + $0x138] sm:$0xf]
    %v300 = vld [vmem:[#allocation2 + $0x13c] sm:$0xf]
    %v301 = vld [vmem:[#allocation2 + $0x140] sm:$0xf]
    %v302 = vld [vmem:[#allocation2 + $0x144] sm:$0xf]
    %v303 = vld [vmem:[#allocation2 + $0x148] sm:$0xf]
    %v304 = vld [vmem:[#allocation2 + $0x14c] sm:$0xf]
    %v305 = vld [vmem:[#allocation2 + $0x150] sm:$0xf]
    %v306 = vld [vmem:[#allocation2 + $0x154] sm:$0xf]
    %v307 = vld [vmem:[#allocation2 + $0x158] sm:$0xf]
    %v308 = vld [vmem:[#allocation2 + $0x15c] sm:$0xf]
    %v309 = vld [vmem:[#allocation2 + $0x160] sm:$0xf]
    %v310 = vld [vmem:[#allocation2 + $0x164] sm:$0xf]
    %v311 = vld [vmem:[#allocation2 + $0x168] sm:$0xf]
    %v312 = vld [vmem:[#allocation2 + $0x16c] sm:$0xf]
    %v313 = vld [vmem:[#allocation2 + $0x170] sm:$0xf]
    %v314 = vld [vmem:[#allocation2 + $0x174] sm:$0xf]
    %v315 = vld [vmem:[#allocation2 + $0x178] sm:$0xf]
    %v316 = vld [vmem:[#allocation2 + $0x17c] sm:$0xf]
    %v317 = vld [vmem:[#allocation2 + $0x180] sm:$0xf]
    %v318 = vld [vmem:[#allocation2 + $0x184] sm:$0xf]
    %v319 = vld [vmem:[#allocation2 + $0x188] sm:$0xf]
    %v320 = vld [vmem:[#allocation2 + $0x18c] sm:$0xf]
    %v321 = vld [vmem:[#allocation2 + $0x190] sm:$0xf]
    %v322 = vld [vmem:[#allocation2 + $0x194] sm:$0xf]
    %v323 = vld [vmem:[#allocation2 + $0x198] sm:$0xf]
    %v324 = vld [vmem:[#allocation2 + $0x19c] sm:$0xf]
    %v325 = vld [vmem:[#allocation2 + $0x1a0] sm:$0xf]
    %v326 = vld [vmem:[#allocation2 + $0x1a4] sm:$0xf]
    %v327 = vld [vmem:[#allocation2 + $0x1a8] sm:$0xf]
    %v328 = vld [vmem:[#allocation2 + $0x1ac] sm:$0xf]
    %v329 = vld [vmem:[#allocation2 + $0x1b0] sm:$0xf]
    %v330 = vld [vmem:[#allocation2 + $0x1b4] sm:$0xf]
    %v331 = vld [vmem:[#allocation2 + $0x1b8] sm:$0xf]
    %v332 = vld [vmem:[#allocation2 + $0x1bc] sm:$0xf]
    %v333 = vld [vmem:[#allocation2 + $0x1c0] sm:$0xf]
    %v334 = vld [vmem:[#allocation2 + $0x1c4] sm:$0xf]
    %v335 = vld [vmem:[#allocation2 + $0x1c8] sm:$0xf]
    %v336 = vld [vmem:[#allocation2 + $0x1cc] sm:$0xf]
    %v337 = vld [vmem:[#allocation2 + $0x1d0] sm:$0xf]
    %v338 = vld [vmem:[#allocation2 + $0x1d4] sm:$0xf]
    %v339 = vld [vmem:[#allocation2 + $0x1d8] sm:$0xf]
    %v340 = vld [vmem:[#allocation2 + $0x1dc] sm:$0xf]
    %v341 = vld [vmem:[#allocation2 + $0x1e0] sm:$0xf]
    %v342 = vld [vmem:[#allocation2 + $0x1e4] sm:$0xf]
    %v343 = vld [vmem:[#allocation2 + $0x1e8] sm:$0xf]
    %v344 = vld [vmem:[#allocation2 + $0x1ec] sm:$0xf]
    %v345 = vld [vmem:[#allocation2 + $0x1f0] sm:$0xf]
    %v346 = vld [vmem:[#allocation2 + $0x1f4] sm:$0xf]
    %v347 = vld [vmem:[#allocation2 + $0x1f8] sm:$0xf]
    %v348 = vld [vmem:[#allocation2 + $0x1fc] sm:$0xf]
    %v350 = vcombine.high %v220, %v220
    %v352 = vunpack.c.l.s4 1966171168
    %v353 = vunpack.c.0.s8 %v352
    %v354 = vlaneseq
    %v355 = vshrl.u32 %v354, 7
    %v356 = vsub.s32 %v353, %v355
    %v357 = vrot.slane %v220, %v356
    %v359 = vunpack.c.l.s4 1966171168
    %v360 = vunpack.c.0.s8 %v359
    %v361 = vlaneseq
    %v362 = vshrl.u32 %v361, 7
    %v363 = vsub.s32 %v360, %v362
    %v364 = vrot.slane %v350, %v363
    %v365 = vcombine.high %v357, %v357
    %v366 = vcombine.high %v364, %v364
    %v368 = vunpack.c.l.s4 1966171168
    %v369 = vunpack.c.0.s8 %v368
    %v370 = vlaneseq
    %v371 = vshrl.u32 %v370, 7
    %v372 = vsub.s32 %v369, %v371
    %v373 = vrot.slane %v357, %v372
    %v375 = vunpack.c.l.s4 1966171168
    %v376 = vunpack.c.0.s8 %v375
    %v377 = vlaneseq
    %v378 = vshrl.u32 %v377, 7
    %v379 = vsub.s32 %v376, %v378
    %v380 = vrot.slane %v364, %v379
    %v382 = vunpack.c.l.s4 1966171168
    %v383 = vunpack.c.0.s8 %v382
    %v384 = vlaneseq
    %v385 = vshrl.u32 %v384, 7
    %v386 = vsub.s32 %v383, %v385
    %v387 = vrot.slane %v365, %v386
    %v389 = vunpack.c.l.s4 1966171168
    %v390 = vunpack.c.0.s8 %v389
    %v391 = vlaneseq
    %v392 = vshrl.u32 %v391, 7
    %v393 = vsub.s32 %v390, %v392
    %v394 = vrot.slane %v366, %v393
    %v395 = vcombine.high %v373, %v373
    %v396 = vcombine.high %v380, %v380
    %v397 = vcombine.high %v387, %v387
    %v398 = vcombine.high %v394, %v394
    %v535 = vunpack.c.l.b16 %v221
    %v536 = vunpack.c.l.b16 %v222
    %v537 = vunpack.c.l.b16 %v223
    %v538 = vunpack.c.l.b16 %v224
    %v539 = vunpack.c.l.b16 %v225
    %v540 = vunpack.c.l.b16 %v226
    %v541 = vunpack.c.l.b16 %v227
    %v542 = vunpack.c.l.b16 %v228
    %v543 = vunpack.c.l.b16 %v229
    %v544 = vunpack.c.l.b16 %v230
    %v545 = vunpack.c.l.b16 %v231
    %v546 = vunpack.c.l.b16 %v232
    %v547 = vunpack.c.l.b16 %v233
    %v548 = vunpack.c.l.b16 %v234
    %v549 = vunpack.c.l.b16 %v235
    %v550 = vunpack.c.l.b16 %v236
    %v551 = vunpack.c.l.b16 %v237
    %v552 = vunpack.c.l.b16 %v238
    %v553 = vunpack.c.l.b16 %v239
    %v554 = vunpack.c.l.b16 %v240
    %v555 = vunpack.c.l.b16 %v241
    %v556 = vunpack.c.l.b16 %v242
    %v557 = vunpack.c.l.b16 %v243
    %v558 = vunpack.c.l.b16 %v244
    %v559 = vunpack.c.l.b16 %v245
    %v560 = vunpack.c.l.b16 %v246
    %v561 = vunpack.c.l.b16 %v247
    %v562 = vunpack.c.l.b16 %v248
    %v563 = vunpack.c.l.b16 %v249
    %v564 = vunpack.c.l.b16 %v250
    %v565 = vunpack.c.l.b16 %v251
    %v566 = vunpack.c.l.b16 %v252
    %v567 = vunpack.c.l.b16 %v253
    %v568 = vunpack.c.l.b16 %v254
    %v569 = vunpack.c.l.b16 %v255
    %v570 = vunpack.c.l.b16 %v256
    %v571 = vunpack.c.l.b16 %v257
    %v572 = vunpack.c.l.b16 %v258
    %v573 = vunpack.c.l.b16 %v259
    %v574 = vunpack.c.l.b16 %v260
    %v575 = vunpack.c.l.b16 %v261
    %v576 = vunpack.c.l.b16 %v262
    %v577 = vunpack.c.l.b16 %v263
    %v578 = vunpack.c.l.b16 %v264
    %v579 = vunpack.c.l.b16 %v265
    %v580 = vunpack.c.l.b16 %v266
    %v581 = vunpack.c.l.b16 %v267
    %v582 = vunpack.c.l.b16 %v268
    %v583 = vunpack.c.l.b16 %v269
    %v584 = vunpack.c.l.b16 %v270
    %v585 = vunpack.c.l.b16 %v271
    %v586 = vunpack.c.l.b16 %v272
    %v587 = vunpack.c.l.b16 %v273
    %v588 = vunpack.c.l.b16 %v274
    %v589 = vunpack.c.l.b16 %v275
    %v590 = vunpack.c.l.b16 %v276
    %v591 = vunpack.c.l.b16 %v277
    %v592 = vunpack.c.l.b16 %v278
    %v593 = vunpack.c.l.b16 %v279
    %v594 = vunpack.c.l.b16 %v280
    %v595 = vunpack.c.l.b16 %v281
    %v596 = vunpack.c.l.b16 %v282
    %v597 = vunpack.c.l.b16 %v283
    %v598 = vunpack.c.l.b16 %v284
    %v599 = vunpack.c.l.b16 %v285
    %v600 = vunpack.c.l.b16 %v286
    %v601 = vunpack.c.l.b16 %v287
    %v602 = vunpack.c.l.b16 %v288
    %v603 = vunpack.c.l.b16 %v289
    %v604 = vunpack.c.l.b16 %v290
    %v605 = vunpack.c.l.b16 %v291
    %v606 = vunpack.c.l.b16 %v292
    %v607 = vunpack.c.l.b16 %v293
    %v608 = vunpack.c.l.b16 %v294
    %v609 = vunpack.c.l.b16 %v295
    %v610 = vunpack.c.l.b16 %v296
    %v611 = vunpack.c.l.b16 %v297
    %v612 = vunpack.c.l.b16 %v298
    %v613 = vunpack.c.l.b16 %v299
    %v614 = vunpack.c.l.b16 %v300
    %v615 = vunpack.c.l.b16 %v301
    %v616 = vunpack.c.l.b16 %v302
    %v617 = vunpack.c.l.b16 %v303
    %v618 = vunpack.c.l.b16 %v304
    %v619 = vunpack.c.l.b16 %v305
    %v620 = vunpack.c.l.b16 %v306
    %v621 = vunpack.c.l.b16 %v307
    %v622 = vunpack.c.l.b16 %v308
    %v623 = vunpack.c.l.b16 %v309
    %v624 = vunpack.c.l.b16 %v310
    %v625 = vunpack.c.l.b16 %v311
    %v626 = vunpack.c.l.b16 %v312
    %v627 = vunpack.c.l.b16 %v313
    %v628 = vunpack.c.l.b16 %v314
    %v629 = vunpack.c.l.b16 %v315
    %v630 = vunpack.c.l.b16 %v316
    %v631 = vunpack.c.l.b16 %v317
    %v632 = vunpack.c.l.b16 %v318
    %v633 = vunpack.c.l.b16 %v319
    %v634 = vunpack.c.l.b16 %v320
    %v635 = vunpack.c.l.b16 %v321
    %v636 = vunpack.c.l.b16 %v322
    %v637 = vunpack.c.l.b16 %v323
    %v638 = vunpack.c.l.b16 %v324
    %v639 = vunpack.c.l.b16 %v325
    %v640 = vunpack.c.l.b16 %v326
    %v641 = vunpack.c.l.b16 %v327
    %v642 = vunpack.c.l.b16 %v328
    %v643 = vunpack.c.l.b16 %v329
    %v644 = vunpack.c.l.b16 %v330
    %v645 = vunpack.c.l.b16 %v331
    %v646 = vunpack.c.l.b16 %v332
    %v647 = vunpack.c.l.b16 %v333
    %v648 = vunpack.c.l.b16 %v334
    %v649 = vunpack.c.l.b16 %v335
    %v650 = vunpack.c.l.b16 %v336
    %v651 = vunpack.c.l.b16 %v337
    %v652 = vunpack.c.l.b16 %v338
    %v653 = vunpack.c.l.b16 %v339
    %v654 = vunpack.c.l.b16 %v340
    %v655 = vunpack.c.l.b16 %v341
    %v656 = vunpack.c.l.b16 %v342
    %v657 = vunpack.c.l.b16 %v343
    %v658 = vunpack.c.l.b16 %v344
    %v659 = vunpack.c.l.b16 %v345
    %v660 = vunpack.c.l.b16 %v346
    %v661 = vunpack.c.l.b16 %v347
    %v662 = vunpack.c.l.b16 %v348
    %v663 = vpack.c.b16 %v536, %v535
    %v664 = vpack.c.b16 %v538, %v537
    %v665 = vpack.c.b16 %v540, %v539
    %v666 = vpack.c.b16 %v542, %v541
    %v667 = vpack.c.b16 %v544, %v543
    %v668 = vpack.c.b16 %v546, %v545
    %v669 = vpack.c.b16 %v548, %v547
    %v670 = vpack.c.b16 %v550, %v549
    %v671 = vpack.c.b16 %v552, %v551
    %v672 = vpack.c.b16 %v554, %v553
    %v673 = vpack.c.b16 %v556, %v555
    %v674 = vpack.c.b16 %v558, %v557
    %v675 = vpack.c.b16 %v560, %v559
    %v676 = vpack.c.b16 %v562, %v561
    %v677 = vpack.c.b16 %v564, %v563
    %v678 = vpack.c.b16 %v566, %v565
    %v679 = vpack.c.b16 %v568, %v567
    %v680 = vpack.c.b16 %v570, %v569
    %v681 = vpack.c.b16 %v572, %v571
    %v682 = vpack.c.b16 %v574, %v573
    %v683 = vpack.c.b16 %v576, %v575
    %v684 = vpack.c.b16 %v578, %v577
    %v685 = vpack.c.b16 %v580, %v579
    %v686 = vpack.c.b16 %v582, %v581
    %v687 = vpack.c.b16 %v584, %v583
    %v688 = vpack.c.b16 %v586, %v585
    %v689 = vpack.c.b16 %v588, %v587
    %v690 = vpack.c.b16 %v590, %v589
    %v691 = vpack.c.b16 %v592, %v591
    %v692 = vpack.c.b16 %v594, %v593
    %v693 = vpack.c.b16 %v596, %v595
    %v694 = vpack.c.b16 %v598, %v597
    %v695 = vpack.c.b16 %v600, %v599
    %v696 = vpack.c.b16 %v602, %v601
    %v697 = vpack.c.b16 %v604, %v603
    %v698 = vpack.c.b16 %v606, %v605
    %v699 = vpack.c.b16 %v608, %v607
    %v700 = vpack.c.b16 %v610, %v609
    %v701 = vpack.c.b16 %v612, %v611
    %v702 = vpack.c.b16 %v614, %v613
    %v703 = vpack.c.b16 %v616, %v615
    %v704 = vpack.c.b16 %v618, %v617
    %v705 = vpack.c.b16 %v620, %v619
    %v706 = vpack.c.b16 %v622, %v621
    %v707 = vpack.c.b16 %v624, %v623
    %v708 = vpack.c.b16 %v626, %v625
    %v709 = vpack.c.b16 %v628, %v627
    %v710 = vpack.c.b16 %v630, %v629
    %v711 = vpack.c.b16 %v632, %v631
    %v712 = vpack.c.b16 %v634, %v633
    %v713 = vpack.c.b16 %v636, %v635
    %v714 = vpack.c.b16 %v638, %v637
    %v715 = vpack.c.b16 %v640, %v639
    %v716 = vpack.c.b16 %v642, %v641
    %v717 = vpack.c.b16 %v644, %v643
    %v718 = vpack.c.b16 %v646, %v645
    %v719 = vpack.c.b16 %v648, %v647
    %v720 = vpack.c.b16 %v650, %v649
    %v721 = vpack.c.b16 %v652, %v651
    %v722 = vpack.c.b16 %v654, %v653
    %v723 = vpack.c.b16 %v656, %v655
    %v724 = vpack.c.b16 %v658, %v657
    %v725 = vpack.c.b16 %v660, %v659
    %v726 = vpack.c.b16 %v662, %v661
    %791 = vmatprep.subr.bf16.mxu0 0
    %792 = vmatpush1.bf16.msra.mxu0 %v670
    %793 = vmatprep.subr.bf16.mxu0 0
    %794 = vmatpush1.bf16.msra.mxu0 %v669
    %795 = vmatprep.subr.bf16.mxu0 0
    %796 = vmatpush1.bf16.msra.mxu0 %v668
    %797 = vmatprep.subr.bf16.mxu0 0
    %798 = vmatpush1.bf16.msra.mxu0 %v667
    %799 = vmatprep.subr.bf16.mxu0 0
    %800 = vmatpush1.bf16.msra.mxu0 %v666
    %801 = vmatprep.subr.bf16.mxu0 0
    %802 = vmatpush1.bf16.msra.mxu0 %v665
    %803 = vmatprep.subr.bf16.mxu0 0
    %804 = vmatpush1.bf16.msra.mxu0 %v664
    %805 = vmatprep.subr.bf16.mxu0 0
    %806 = vmatpush1.bf16.msra.mxu0 %v663
    %807 = vmatprep.subr.bf16.mxu0 0
    %808 = vmatpush2.bf16.msra.mxu0 %v678
    %809 = vmatprep.subr.bf16.mxu0 0
    %810 = vmatpush2.bf16.msra.mxu0 %v677
    %811 = vmatprep.subr.bf16.mxu0 0
    %812 = vmatpush2.bf16.msra.mxu0 %v676
    %813 = vmatprep.subr.bf16.mxu0 0
    %814 = vmatpush2.bf16.msra.mxu0 %v675
    %815 = vmatprep.subr.bf16.mxu0 0
    %816 = vmatpush2.bf16.msra.mxu0 %v674
    %817 = vmatprep.subr.bf16.mxu0 0
    %818 = vmatpush2.bf16.msra.mxu0 %v673
    %819 = vmatprep.subr.bf16.mxu0 0
    %820 = vmatpush2.bf16.msra.mxu0 %v672
    %821 = vmatprep.subr.bf16.mxu0 0
    %822 = vmatpush2.bf16.msra.mxu0 %v671
    %823 = vmatprep.mubr.bf16.mxu0 %v387
    %824 = vmatmul.mubr.bf16.gmra.mxu0 %v373
    %v825 = vpop.f32.mrf.mxu0
    %v826 = vadd.f32 0.0, %v825
    %v827 = vpop.f32.mrf.mxu0
    %v828 = vpop.f32.mrf.mxu0
    %v829 = vpop.f32.mrf.mxu0
    %830 = vdwg.mxu0
    %831 = vmatprep.subr.bf16.mxu0 0
    %832 = vmatpush1.bf16.msra.mxu0 %v686
    %833 = vmatprep.subr.bf16.mxu0 0
    %834 = vmatpush1.bf16.msra.mxu0 %v685
    %835 = vmatprep.subr.bf16.mxu0 0
    %836 = vmatpush1.bf16.msra.mxu0 %v684
    %837 = vmatprep.subr.bf16.mxu0 0
    %838 = vmatpush1.bf16.msra.mxu0 %v683
    %839 = vmatprep.subr.bf16.mxu0 0
    %840 = vmatpush1.bf16.msra.mxu0 %v682
    %841 = vmatprep.subr.bf16.mxu0 0
    %842 = vmatpush1.bf16.msra.mxu0 %v681
    %843 = vmatprep.subr.bf16.mxu0 0
    %844 = vmatpush1.bf16.msra.mxu0 %v680
    %845 = vmatprep.subr.bf16.mxu0 0
    %846 = vmatpush1.bf16.msra.mxu0 %v679
    %847 = vmatprep.subr.bf16.mxu0 0
    %848 = vmatpush2.bf16.msra.mxu0 %v694
    %849 = vmatprep.subr.bf16.mxu0 0
    %850 = vmatpush2.bf16.msra.mxu0 %v693
    %851 = vmatprep.subr.bf16.mxu0 0
    %852 = vmatpush2.bf16.msra.mxu0 %v692
    %853 = vmatprep.subr.bf16.mxu0 0
    %854 = vmatpush2.bf16.msra.mxu0 %v691
    %855 = vmatprep.subr.bf16.mxu0 0
    %856 = vmatpush2.bf16.msra.mxu0 %v690
    %857 = vmatprep.subr.bf16.mxu0 0
    %858 = vmatpush2.bf16.msra.mxu0 %v689
    %859 = vmatprep.subr.bf16.mxu0 0
    %860 = vmatpush2.bf16.msra.mxu0 %v688
    %861 = vmatprep.subr.bf16.mxu0 0
    %862 = vmatpush2.bf16.msra.mxu0 %v687
    %863 = vmatprep.mubr.bf16.mxu0 %v397
    %864 = vmatmul.mubr.bf16.gmra.mxu0 %v395
    %v865 = vpop.f32.mrf.mxu0
    %v866 = vadd.f32 %v826, %v865
    %v867 = vpop.f32.mrf.mxu0
    %v868 = vpop.f32.mrf.mxu0
    %v869 = vpop.f32.mrf.mxu0
    %870 = vdwg.mxu0
    %871 = vmatprep.subr.bf16.mxu0 0
    %872 = vmatpush1.bf16.msra.mxu0 %v702
    %873 = vmatprep.subr.bf16.mxu0 0
    %874 = vmatpush1.bf16.msra.mxu0 %v701
    %875 = vmatprep.subr.bf16.mxu0 0
    %876 = vmatpush1.bf16.msra.mxu0 %v700
    %877 = vmatprep.subr.bf16.mxu0 0
    %878 = vmatpush1.bf16.msra.mxu0 %v699
    %879 = vmatprep.subr.bf16.mxu0 0
    %880 = vmatpush1.bf16.msra.mxu0 %v698
    %881 = vmatprep.subr.bf16.mxu0 0
    %882 = vmatpush1.bf16.msra.mxu0 %v697
    %883 = vmatprep.subr.bf16.mxu0 0
    %884 = vmatpush1.bf16.msra.mxu0 %v696
    %885 = vmatprep.subr.bf16.mxu0 0
    %886 = vmatpush1.bf16.msra.mxu0 %v695
    %887 = vmatprep.subr.bf16.mxu0 0
    %888 = vmatpush2.bf16.msra.mxu0 %v710
    %889 = vmatprep.subr.bf16.mxu0 0
    %890 = vmatpush2.bf16.msra.mxu0 %v709
    %891 = vmatprep.subr.bf16.mxu0 0
    %892 = vmatpush2.bf16.msra.mxu0 %v708
    %893 = vmatprep.subr.bf16.mxu0 0
    %894 = vmatpush2.bf16.msra.mxu0 %v707
    %895 = vmatprep.subr.bf16.mxu0 0
    %896 = vmatpush2.bf16.msra.mxu0 %v706
    %897 = vmatprep.subr.bf16.mxu0 0
    %898 = vmatpush2.bf16.msra.mxu0 %v705
    %899 = vmatprep.subr.bf16.mxu0 0
    %900 = vmatpush2.bf16.msra.mxu0 %v704
    %901 = vmatprep.subr.bf16.mxu0 0
    %902 = vmatpush2.bf16.msra.mxu0 %v703
    %903 = vmatprep.mubr.bf16.mxu0 %v394
    %904 = vmatmul.mubr.bf16.gmra.mxu0 %v380
    %v905 = vpop.f32.mrf.mxu0
    %v906 = vadd.f32 %v866, %v905
    %v907 = vpop.f32.mrf.mxu0
    %v908 = vpop.f32.mrf.mxu0
    %v909 = vpop.f32.mrf.mxu0
    %910 = vdwg.mxu0
    %911 = vmatprep.subr.bf16.mxu0 0
    %912 = vmatpush1.bf16.msra.mxu0 %v718
    %913 = vmatprep.subr.bf16.mxu0 0
    %914 = vmatpush1.bf16.msra.mxu0 %v717
    %915 = vmatprep.subr.bf16.mxu0 0
    %916 = vmatpush1.bf16.msra.mxu0 %v716
    %917 = vmatprep.subr.bf16.mxu0 0
    %918 = vmatpush1.bf16.msra.mxu0 %v715
    %919 = vmatprep.subr.bf16.mxu0 0
    %920 = vmatpush1.bf16.msra.mxu0 %v714
    %921 = vmatprep.subr.bf16.mxu0 0
    %922 = vmatpush1.bf16.msra.mxu0 %v713
    %923 = vmatprep.subr.bf16.mxu0 0
    %924 = vmatpush1.bf16.msra.mxu0 %v712
    %925 = vmatprep.subr.bf16.mxu0 0
    %926 = vmatpush1.bf16.msra.mxu0 %v711
    %927 = vmatprep.subr.bf16.mxu0 0
    %928 = vmatpush2.bf16.msra.mxu0 %v726
    %929 = vmatprep.subr.bf16.mxu0 0
    %930 = vmatpush2.bf16.msra.mxu0 %v725
    %931 = vmatprep.subr.bf16.mxu0 0
    %932 = vmatpush2.bf16.msra.mxu0 %v724
    %933 = vmatprep.subr.bf16.mxu0 0
    %934 = vmatpush2.bf16.msra.mxu0 %v723
    %935 = vmatprep.subr.bf16.mxu0 0
    %936 = vmatpush2.bf16.msra.mxu0 %v722
    %937 = vmatprep.subr.bf16.mxu0 0
    %938 = vmatpush2.bf16.msra.mxu0 %v721
    %939 = vmatprep.subr.bf16.mxu0 0
    %940 = vmatpush2.bf16.msra.mxu0 %v720
    %941 = vmatprep.subr.bf16.mxu0 0
    %942 = vmatpush2.bf16.msra.mxu0 %v719
    %943 = vmatprep.mubr.bf16.mxu0 %v398
    %944 = vmatmul.mubr.bf16.gmra.mxu0 %v396
    %v945 = vpop.f32.mrf.mxu0
    %v946 = vadd.f32 %v906, %v945
    %v947 = vpop.f32.mrf.mxu0
    %v948 = vpop.f32.mrf.mxu0
    %v949 = vpop.f32.mrf.mxu0
    %950 = vdwg.mxu0
    %v951 = vld [vmem:[#allocation5] sm:$0xff]
    %v952 = vld [vmem:[#allocation5 + $0x8] sm:$0xff]
    %v953 = vld [vmem:[#allocation5 + $0x10] sm:$0xff]
    %v954 = vld [vmem:[#allocation5 + $0x18] sm:$0xff]
    %vm955 = vcmask 261120
    %v957 = vsel %vm955, %v219, 0
    %959 = vmatprep.subr.mxu0 0.0
    %960 = vmatpush1.msra.mxu0 0.0
    %961 = vmatprep.subr.mxu0 0.0
    %962 = vmatpush1.msra.mxu0 0.0
    %963 = vmatprep.subr.mxu0 0.0
    %964 = vmatpush1.msra.mxu0 0.0
    %965 = vmatprep.subr.mxu0 0.0
    %966 = vmatpush1.msra.mxu0 0.0
    %967 = vmatprep.subr.mxu0 0.0
    %968 = vmatpush1.msra.mxu0 0.0
    %969 = vmatprep.subr.mxu0 0.0
    %970 = vmatpush1.msra.mxu0 0.0
    %971 = vmatprep.subr.mxu0 0.0
    %972 = vmatpush1.msra.mxu0 0.0
    %973 = vmatprep.subr.mxu0 0.0
    %974 = vmatpush1.msra.mxu0 0.0
    %975 = vmatprep.subr.mxu0 0.0
    %976 = vmatpush1.msra.mxu0 0.0
    %977 = vmatprep.subr.mxu0 0.0
    %978 = vmatpush1.msra.mxu0 0.0
    %979 = vmatprep.subr.mxu0 0.0
    %980 = vmatpush1.msra.mxu0 0.0
    %981 = vmatprep.subr.mxu0 0.0
    %982 = vmatpush1.msra.mxu0 0.0
    %983 = vmatprep.subr.mxu0 0.0
    %984 = vmatpush1.msra.mxu0 %v954
    %985 = vmatprep.subr.mxu0 0.0
    %986 = vmatpush1.msra.mxu0 %v953
    %987 = vmatprep.subr.mxu0 0.0
    %988 = vmatpush1.msra.mxu0 %v952
    %989 = vmatprep.subr.mxu0 0.0
    %990 = vmatpush1.msra.mxu0 %v951
    %991 = vmatprep.subr.mxu0 0.0
    %992 = vmatpush2.msra.mxu0 0.0
    %993 = vmatprep.subr.mxu0 0.0
    %994 = vmatpush2.msra.mxu0 0.0
    %995 = vmatprep.subr.mxu0 0.0
    %996 = vmatpush2.msra.mxu0 0.0
    %997 = vmatprep.subr.mxu0 0.0
    %998 = vmatpush2.msra.mxu0 0.0
    %999 = vmatprep.subr.mxu0 0.0
    %1000 = vmatpush2.msra.mxu0 0.0
    %1001 = vmatprep.subr.mxu0 0.0
    %1002 = vmatpush2.msra.mxu0 0.0
    %1003 = vmatprep.subr.mxu0 0.0
    %1004 = vmatpush2.msra.mxu0 0.0
    %1005 = vmatprep.subr.mxu0 0.0
    %1006 = vmatpush2.msra.mxu0 0.0
    %1007 = vmatprep.subr.mxu0 0.0
    %1008 = vmatpush2.msra.mxu0 0.0
    %1009 = vmatprep.subr.mxu0 0.0
    %1010 = vmatpush2.msra.mxu0 0.0
    %1011 = vmatprep.subr.mxu0 0.0
    %1012 = vmatpush2.msra.mxu0 0.0
    %1013 = vmatprep.subr.mxu0 0.0
    %1014 = vmatpush2.msra.mxu0 0.0
    %1015 = vmatprep.subr.mxu0 0.0
    %1016 = vmatpush2.msra.mxu0 0.0
    %1017 = vmatprep.subr.mxu0 0.0
    %1018 = vmatpush2.msra.mxu0 0.0
    %1019 = vmatprep.subr.mxu0 0.0
    %1020 = vmatpush2.msra.mxu0 0.0
    %1021 = vmatprep.subr.mxu0 0.0
    %1022 = vmatpush2.msra.mxu0 0.0
    %1023 = vmatprep.mubr.f32.mxu0 0.0
    %1024 = vmatmul.mubr.f32.gmra.mxu0 %v957
    %v1025 = vpop.f32.mrf.mxu0
    %v1026 = vadd.f32 %v946, %v1025
    %v1027 = vpop.f32.mrf.mxu0
    %1028 = vdwg.mxu0
    %v1029 = vld [vmem:[#allocation5 + $0x20] sm:$0x1]
    %v1030 = vlaneseq
    %v1031 = vshrl.u32 %v1030, 7
    %v1032 = vsub.s32 0, %v1031
    %v1033 = vrot.slane %v1029, %v1032
    %v1034 = vadd.f32 %v1026, %v1033
    %v1035 = vtanh.pop %v1034
    %v1036 = vld [vmem:[#allocation5 + $0x28] sm:$0xff]
    %v1037 = vld [vmem:[#allocation5 + $0x30] sm:$0xff]
    %v1038 = vld [vmem:[#allocation5 + $0x38] sm:$0xff]
    %v1039 = vld [vmem:[#allocation5 + $0x40] sm:$0xff]
    %v1040 = vld [vmem:[#allocation5 + $0x48] sm:$0xff]
    %v1041 = vld [vmem:[#allocation5 + $0x50] sm:$0xff]
    %v1042 = vld [vmem:[#allocation5 + $0x58] sm:$0xff]
    %v1043 = vld [vmem:[#allocation5 + $0x60] sm:$0xff]
    %v1044 = vld [vmem:[#allocation5 + $0x68] sm:$0xff]
    %v1045 = vld [vmem:[#allocation5 + $0x70] sm:$0xff]
    %v1046 = vld [vmem:[#allocation5 + $0x78] sm:$0xff]
    %v1047 = vld [vmem:[#allocation5 + $0x80] sm:$0xff]
    %v1048 = vld [vmem:[#allocation5 + $0x88] sm:$0xff]
    %v1049 = vld [vmem:[#allocation5 + $0x90] sm:$0xff]
    %v1050 = vld [vmem:[#allocation5 + $0x98] sm:$0xff]
    %v1051 = vld [vmem:[#allocation5 + $0xa0] sm:$0xff]
    %v1052 = vld [vmem:[#allocation5 + $0xa8] sm:$0x1]
    %v1053 = vlaneseq
    %v1054 = vshrl.u32 %v1053, 7
    %v1055 = vsub.s32 0, %v1054
    %v1056 = vrot.slane %v1052, %v1055
    %1057 = vmatprep.subr.mxu0 0.0
    %1058 = vmatpush1.msra.mxu0 %v1051
    %1059 = vmatprep.subr.mxu0 0.0
    %1060 = vmatpush1.msra.mxu0 %v1050
    %1061 = vmatprep.subr.mxu0 0.0
    %1062 = vmatpush1.msra.mxu0 %v1049
    %1063 = vmatprep.subr.mxu0 0.0
    %1064 = vmatpush1.msra.mxu0 %v1048
    %1065 = vmatprep.subr.mxu0 0.0
    %1066 = vmatpush1.msra.mxu0 %v1047
    %1067 = vmatprep.subr.mxu0 0.0
    %1068 = vmatpush1.msra.mxu0 %v1046
    %1069 = vmatprep.subr.mxu0 0.0
    %1070 = vmatpush1.msra.mxu0 %v1045
    %1071 = vmatprep.subr.mxu0 0.0
    %1072 = vmatpush1.msra.mxu0 %v1044
    %1073 = vmatprep.subr.mxu0 0.0
    %1074 = vmatpush1.msra.mxu0 %v1043
    %1075 = vmatprep.subr.mxu0 0.0
    %1076 = vmatpush1.msra.mxu0 %v1042
    %1077 = vmatprep.subr.mxu0 0.0
    %1078 = vmatpush1.msra.mxu0 %v1041
    %1079 = vmatprep.subr.mxu0 0.0
    %1080 = vmatpush1.msra.mxu0 %v1040
    %1081 = vmatprep.subr.mxu0 0.0
    %1082 = vmatpush1.msra.mxu0 %v1039
    %1083 = vmatprep.subr.mxu0 0.0
    %1084 = vmatpush1.msra.mxu0 %v1038
    %1085 = vmatprep.subr.mxu0 0.0
    %1086 = vmatpush1.msra.mxu0 %v1037
    %1087 = vmatprep.subr.mxu0 0.0
    %1088 = vmatpush1.msra.mxu0 %v1036
    %1089 = vmatprep.subr.mxu0 0.0
    %1090 = vmatpush2.msra.mxu0 0.0
    %1091 = vmatprep.subr.mxu0 0.0
    %1092 = vmatpush2.msra.mxu0 0.0
    %1093 = vmatprep.subr.mxu0 0.0
    %1094 = vmatpush2.msra.mxu0 0.0
    %1095 = vmatprep.subr.mxu0 0.0
    %1096 = vmatpush2.msra.mxu0 0.0
    %1097 = vmatprep.subr.mxu0 0.0
    %1098 = vmatpush2.msra.mxu0 0.0
    %1099 = vmatprep.subr.mxu0 0.0
    %1100 = vmatpush2.msra.mxu0 0.0
    %1101 = vmatprep.subr.mxu0 0.0
    %1102 = vmatpush2.msra.mxu0 0.0
    %1103 = vmatprep.subr.mxu0 0.0
    %1104 = vmatpush2.msra.mxu0 0.0
    %1105 = vmatprep.subr.mxu0 0.0
    %1106 = vmatpush2.msra.mxu0 0.0
    %1107 = vmatprep.subr.mxu0 0.0
    %1108 = vmatpush2.msra.mxu0 0.0
    %1109 = vmatprep.subr.mxu0 0.0
    %1110 = vmatpush2.msra.mxu0 0.0
    %1111 = vmatprep.subr.mxu0 0.0
    %1112 = vmatpush2.msra.mxu0 0.0
    %1113 = vmatprep.subr.mxu0 0.0
    %1114 = vmatpush2.msra.mxu0 0.0
    %1115 = vmatprep.subr.mxu0 0.0
    %1116 = vmatpush2.msra.mxu0 0.0
    %1117 = vmatprep.subr.mxu0 0.0
    %1118 = vmatpush2.msra.mxu0 0.0
    %1119 = vmatprep.subr.mxu0 0.0
    %1120 = vmatpush2.msra.mxu0 0.0
    %1121 = vmatprep.mubr.f32.mxu0 0.0
    %1122 = vmatmul.mubr.f32.gmra.mxu0 %v1035
    %v1123 = vpop.f32.mrf.mxu0
    %v1124 = vadd.f32 %v1056, %v1123
    %v1125 = vpop.f32.mrf.mxu0
    %1126 = vdwg.mxu0
    %1127 = vst [vmem:[#allocation7] sm:$0x3] %v1124
    // Predicated region
    $region30: #{tpu_custom_call.1} parent=1 // pred_check
      _
    $region31: #{tpu_custom_call.1} parent=1 // pred_check_branch
      %1129 = sbr.rel (0) target = $region33
    $region32: #{tpu_custom_call.1} parent=1 // pred_region
      %s1131 = ssub.s32 32, 32
      %1132 = vsyncadd [#allocation4], %s1131
      %s1134 = sshll.u32 [#allocation7], 4
      %s1135 = int_to_ptr.vmem [resolvable:$true] %s1134
      %1137 = dma.vmem_to_hbm [thread:$0]  %s1135, 32, %s5, [#allocation4]
    $region33: #{tpu_custom_call.1} parent=1 // pred_fallthru
      _
    // Predicated region
    $region34: #{tpu_custom_call.1} parent=1 // pred_check
      _
    $region35: #{tpu_custom_call.1} parent=1 // pred_check_branch
      %1139 = sbr.rel (0) target = $region37
    $region36: #{tpu_custom_call.1} parent=1 // pred_region
      %1140 = dma.done [#allocation4], 32
    $region37: #{tpu_custom_call.1} parent=1 // pred_fallthru
      _
    %1141 = vsyncpa [#allocation3], 1
    %1142 = vsyncpa [#allocation6], 1
    %1143 = vsyncpa [#allocation4], 1

</llo_original>
